<compile_context>
chip_gen: v7x
topology: tpu7x:2x2x1
jax: 0.10.0
libtpu: 0.0.40
codegen_flags: <defaults>
</compile_context>

<pallas_src>
import functools

import jax
import jax.numpy as jnp
from jax.experimental import pallas as pl
from jax.experimental.pallas import tpu as pltpu

IN_CH = 3
OUT_CH = 1
HIDDEN = 40
N_LAYERS = 7
TM_MAX = 2048  # lane tile; VMEM use is a few hundred KB even at 4096


def mlp_kernel(x_ref, w_ref, b_ref, o_ref, *, act_dtype):
    # x_ref: (IN_CH, TM) f32   w_ref: (7, H, H) bf16 (zero-padded)
    # b_ref: (H, 7) f32        o_ref: (OUT_CH, TM) f32
    h = x_ref[...].astype(jnp.bfloat16)                       # (IN_CH, TM)

    # Layer 1: (H, IN_CH) @ (IN_CH, TM), f32 accumulate on the MXU.
    w1 = w_ref[0][:, :IN_CH]
    acc = jnp.dot(w1, h, preferred_element_type=jnp.float32) + b_ref[:, 0:1]
    h = jnp.tanh(acc.astype(act_dtype)).astype(jnp.bfloat16)

    # Layers 2..6: (H, H) @ (H, TM).
    for l in range(1, 6):
        acc = (jnp.dot(w_ref[l], h, preferred_element_type=jnp.float32)
               + b_ref[:, l:l + 1])
        h = jnp.tanh(acc.astype(act_dtype)).astype(jnp.bfloat16)

    # Layer 7 (no activation): only the first 8 (one sublane group) rows of the
    # zero-padded weight -> ~5x fewer MXU result pops/stores than popping all 40.
    w7 = w_ref[6][:8, :]
    out8 = jnp.dot(w7, h, preferred_element_type=jnp.float32)  # (8, TM)
    o_ref[...] = out8[:OUT_CH, :] + b_ref[:OUT_CH, 6:7]
    # TODO(synk): if a v5e bundle dump shows vst-bound, add an inner lane-chunk
    # loop (256 lanes) and/or fold biases into the MXU via a ones-row.


def init_params(key, in_channels=IN_CH, out_channels=OUT_CH, hidden=HIDDEN):
    """Per-layer params in PyTorch layout: W (out, in) xavier-normal, b zero."""
    dims = [in_channels] + [hidden] * 6 + [out_channels]
    ws, bs = [], []
    for i in range(N_LAYERS):
        fan_in, fan_out = dims[i], dims[i + 1]
        key, sub = jax.random.split(key)
        std = (2.0 / (fan_in + fan_out)) ** 0.5
        ws.append(std * jax.random.normal(sub, (fan_out, fan_in), dtype=jnp.float32))
        bs.append(jnp.zeros((fan_out,), dtype=jnp.float32))
    return ws, bs


def pack_params(ws, bs, hidden=HIDDEN):
    """Pack weights into bf16 (7, H, H) and biases into f32 (H, 7), zero-padded."""
    w_slab = jnp.zeros((N_LAYERS, hidden, hidden), jnp.float32)
    b_slab = jnp.zeros((hidden, N_LAYERS), jnp.float32)
    for l, (w, b) in enumerate(zip(ws, bs)):
        out_f, in_f = w.shape
        w_slab = w_slab.at[l, :out_f, :in_f].set(w)
        b_slab = b_slab.at[:out_f, l].set(b)
    return w_slab.astype(jnp.bfloat16), b_slab


def _act_dtype():
    """bf16 activations/tanh on chips with a bf16 VPU/EUP (v6e/v7x), f32 otherwise."""
    try:
        kind = jax.devices()[0].device_kind.lower()
    except Exception:
        return jnp.bfloat16
    if any(v in kind for v in ("v2", "v3", "v4", "v5")):
        return jnp.float32
    return jnp.bfloat16


def mlp_forward(x, w_slab, b_slab, tm_max=TM_MAX):
    x = x.astype(jnp.float32)
    n = x.shape[0]
    # Lane tile: multiple of 128; aim for >=2 grid blocks so v7x's two
    # TensorCores both get work, then cap at tm_max for big batches.
    half = pl.cdiv(n, 2)
    tm = min(tm_max, max(128, pl.cdiv(half, 128) * 128))
    n_pad = pl.cdiv(n, tm) * tm

    # Feature-major, lane-dense input; the pad is folded into the transpose.
    x_t = jnp.zeros((IN_CH, n_pad), jnp.float32).at[:, :n].set(x.T)

    flops = 2 * n_pad * (IN_CH * HIDDEN + 5 * HIDDEN * HIDDEN + HIDDEN * 8)
    transcendentals = 6 * HIDDEN * n_pad
    bytes_accessed = (4 * n_pad * (IN_CH + OUT_CH)
                      + 2 * w_slab.size + 4 * b_slab.size)

    kernel = functools.partial(mlp_kernel, act_dtype=_act_dtype())
    out = pl.pallas_call(
        kernel,
        out_shape=jax.ShapeDtypeStruct((OUT_CH, n_pad), jnp.float32),
        grid_spec=pltpu.PrefetchScalarGridSpec(
            num_scalar_prefetch=0,
            grid=(n_pad // tm,),
            in_specs=[
                pl.BlockSpec((IN_CH, tm), lambda i: (0, i)),
                pl.BlockSpec(w_slab.shape, lambda i: (0, 0, 0)),  # VMEM-resident
                pl.BlockSpec(b_slab.shape, lambda i: (0, 0)),     # VMEM-resident
            ],
            out_specs=pl.BlockSpec((OUT_CH, tm), lambda i: (0, i)),
        ),
        compiler_params=pltpu.CompilerParams(
            dimension_semantics=("parallel",)),  # shards batch tiles on v7x's 2 TCs
        cost_estimate=pl.CostEstimate(
            flops=flops, transcendentals=transcendentals,
            bytes_accessed=bytes_accessed),
    )(x_t, w_slab, b_slab)
    return out[:, :n].T  # (n, OUT_CH)


def mlp_reference(x, ws, bs):
    h = x.astype(jnp.float32)
    for i, (w, b) in enumerate(zip(ws, bs)):
        h = h @ w.T + b           # PyTorch nn.Linear semantics
        if i < len(ws) - 1:
            h = jnp.tanh(h)
    return h


if __name__ == "__main__":
    key = jax.random.PRNGKey(0)
    pkey, xkey = jax.random.split(key)
    ws, bs = init_params(pkey)
    w_slab, b_slab = pack_params(ws, bs)

    # Small batch of collocation points (N, 3), as the Poisson DFVM MLP expects.
    x = jax.random.uniform(xkey, (200, IN_CH), dtype=jnp.float32)

    y = mlp_forward(x, w_slab, b_slab)
    y = jax.block_until_ready(y)

    y_ref = mlp_reference(x, ws, bs)
    assert y.shape == (200, OUT_CH)
    # bf16 matmul operands (f32 accumulate) -> loosened tolerance vs f32 reference.
    assert jnp.allclose(y, y_ref, atol=3e-2, rtol=3e-2)

    print("KERNEL_OK")
</pallas_src>

<mosaic_0001>
module attributes {stable_mosaic.version = 11 : i64} {
  func.func @mlp_kernel(%arg0: i32, %arg1: memref<3x128xf32, #tpu.memory_space<vmem>>, %arg2: memref<7x40x40xbf16, #tpu.memory_space<vmem>>, %arg3: memref<40x7xf32, #tpu.memory_space<vmem>>, %arg4: memref<1x128xf32, #tpu.memory_space<vmem>>) attributes {dimension_semantics = [#tpu.dimension_semantics<parallel>], iteration_bounds = array<i64: 2>, scalar_prefetch = 0 : i64, scratch_operands = 0 : i64, tpu.core_type = #tpu.core_type<tc>, window_params = [{transform_indices = @transform_0, window_bounds = array<i64: 3, 128>}, {pipeline_mode = #tpu.pipeline_mode<synchronous>, transform_indices = @transform_1, window_bounds = array<i64: 7, 40, 40>}, {pipeline_mode = #tpu.pipeline_mode<synchronous>, transform_indices = @transform_2, window_bounds = array<i64: 40, 7>}, {transform_indices = @transform_3, window_bounds = array<i64: 1, 128>}]} {
    %c0 = arith.constant 0 : index
    %c0_0 = arith.constant 0 : index
    %0 = vector.load %arg1[%c0, %c0_0] : memref<3x128xf32, #tpu.memory_space<vmem>>, vector<3x128xf32>
    %1 = arith.truncf %0 : vector<3x128xf32> to vector<3x128xbf16>
    %c0_1 = arith.constant 0 : index
    %c0_2 = arith.constant 0 : index
    %c0_3 = arith.constant 0 : index
    %2 = vector.load %arg2[%c0_1, %c0_2, %c0_3] : memref<7x40x40xbf16, #tpu.memory_space<vmem>>, vector<1x40x40xbf16>
    %3 = vector.shape_cast %2 : vector<1x40x40xbf16> to vector<40x40xbf16>
    %4 = vector.extract_strided_slice %3 {offsets = [0, 0], sizes = [40, 3], strides = [1, 1]} : vector<40x40xbf16> to vector<40x3xbf16>
    %cst = arith.constant dense<0.000000e+00> : vector<40x128xf32>
    %5 = tpu.matmul %4, %1, %cst {dimension_numbers = #tpu.dot_dimension_numbers<[1], [0], [0], [1], [0, 0, 1, 1], [], []>} : vector<40x3xbf16>, vector<3x128xbf16>, vector<40x128xf32> -> vector<40x128xf32>
    %c0_4 = arith.constant 0 : index
    %c0_5 = arith.constant 0 : index
    %6 = vector.load %arg3[%c0_4, %c0_5] : memref<40x7xf32, #tpu.memory_space<vmem>>, vector<40x1xf32>
    %7 = vector.broadcast %6 : vector<40x1xf32> to vector<40x128xf32>
    %8 = arith.addf %5, %7 : vector<40x128xf32>
    %9 = arith.truncf %8 : vector<40x128xf32> to vector<40x128xbf16>
    %10 = math.tanh %9 : vector<40x128xbf16>
    %c1 = arith.constant 1 : index
    %c0_6 = arith.constant 0 : index
    %c0_7 = arith.constant 0 : index
    %11 = vector.load %arg2[%c1, %c0_6, %c0_7] : memref<7x40x40xbf16, #tpu.memory_space<vmem>>, vector<1x40x40xbf16>
    %12 = vector.shape_cast %11 : vector<1x40x40xbf16> to vector<40x40xbf16>
    %cst_8 = arith.constant dense<0.000000e+00> : vector<40x128xf32>
    %13 = tpu.matmul %12, %10, %cst_8 {dimension_numbers = #tpu.dot_dimension_numbers<[1], [0], [0], [1], [0, 0, 1, 1], [], []>} : vector<40x40xbf16>, vector<40x128xbf16>, vector<40x128xf32> -> vector<40x128xf32>
    %c0_9 = arith.constant 0 : index
    %c1_10 = arith.constant 1 : index
    %14 = vector.load %arg3[%c0_9, %c1_10] : memref<40x7xf32, #tpu.memory_space<vmem>>, vector<40x1xf32>
    %15 = vector.broadcast %14 : vector<40x1xf32> to vector<40x128xf32>
    %16 = arith.addf %13, %15 : vector<40x128xf32>
    %17 = arith.truncf %16 : vector<40x128xf32> to vector<40x128xbf16>
    %18 = math.tanh %17 : vector<40x128xbf16>
    %c2 = arith.constant 2 : index
    %c0_11 = arith.constant 0 : index
    %c0_12 = arith.constant 0 : index
    %19 = vector.load %arg2[%c2, %c0_11, %c0_12] : memref<7x40x40xbf16, #tpu.memory_space<vmem>>, vector<1x40x40xbf16>
    %20 = vector.shape_cast %19 : vector<1x40x40xbf16> to vector<40x40xbf16>
    %cst_13 = arith.constant dense<0.000000e+00> : vector<40x128xf32>
    %21 = tpu.matmul %20, %18, %cst_13 {dimension_numbers = #tpu.dot_dimension_numbers<[1], [0], [0], [1], [0, 0, 1, 1], [], []>} : vector<40x40xbf16>, vector<40x128xbf16>, vector<40x128xf32> -> vector<40x128xf32>
    %c0_14 = arith.constant 0 : index
    %c2_15 = arith.constant 2 : index
    %22 = vector.load %arg3[%c0_14, %c2_15] : memref<40x7xf32, #tpu.memory_space<vmem>>, vector<40x1xf32>
    %23 = vector.broadcast %22 : vector<40x1xf32> to vector<40x128xf32>
    %24 = arith.addf %21, %23 : vector<40x128xf32>
    %25 = arith.truncf %24 : vector<40x128xf32> to vector<40x128xbf16>
    %26 = math.tanh %25 : vector<40x128xbf16>
    %c3 = arith.constant 3 : index
    %c0_16 = arith.constant 0 : index
    %c0_17 = arith.constant 0 : index
    %27 = vector.load %arg2[%c3, %c0_16, %c0_17] : memref<7x40x40xbf16, #tpu.memory_space<vmem>>, vector<1x40x40xbf16>
    %28 = vector.shape_cast %27 : vector<1x40x40xbf16> to vector<40x40xbf16>
    %cst_18 = arith.constant dense<0.000000e+00> : vector<40x128xf32>
    %29 = tpu.matmul %28, %26, %cst_18 {dimension_numbers = #tpu.dot_dimension_numbers<[1], [0], [0], [1], [0, 0, 1, 1], [], []>} : vector<40x40xbf16>, vector<40x128xbf16>, vector<40x128xf32> -> vector<40x128xf32>
    %c0_19 = arith.constant 0 : index
    %c3_20 = arith.constant 3 : index
    %30 = vector.load %arg3[%c0_19, %c3_20] : memref<40x7xf32, #tpu.memory_space<vmem>>, vector<40x1xf32>
    %31 = vector.broadcast %30 : vector<40x1xf32> to vector<40x128xf32>
    %32 = arith.addf %29, %31 : vector<40x128xf32>
    %33 = arith.truncf %32 : vector<40x128xf32> to vector<40x128xbf16>
    %34 = math.tanh %33 : vector<40x128xbf16>
    %c4 = arith.constant 4 : index
    %c0_21 = arith.constant 0 : index
    %c0_22 = arith.constant 0 : index
    %35 = vector.load %arg2[%c4, %c0_21, %c0_22] : memref<7x40x40xbf16, #tpu.memory_space<vmem>>, vector<1x40x40xbf16>
    %36 = vector.shape_cast %35 : vector<1x40x40xbf16> to vector<40x40xbf16>
    %cst_23 = arith.constant dense<0.000000e+00> : vector<40x128xf32>
    %37 = tpu.matmul %36, %34, %cst_23 {dimension_numbers = #tpu.dot_dimension_numbers<[1], [0], [0], [1], [0, 0, 1, 1], [], []>} : vector<40x40xbf16>, vector<40x128xbf16>, vector<40x128xf32> -> vector<40x128xf32>
    %c0_24 = arith.constant 0 : index
    %c4_25 = arith.constant 4 : index
    %38 = vector.load %arg3[%c0_24, %c4_25] : memref<40x7xf32, #tpu.memory_space<vmem>>, vector<40x1xf32>
    %39 = vector.broadcast %38 : vector<40x1xf32> to vector<40x128xf32>
    %40 = arith.addf %37, %39 : vector<40x128xf32>
    %41 = arith.truncf %40 : vector<40x128xf32> to vector<40x128xbf16>
    %42 = math.tanh %41 : vector<40x128xbf16>
    %c5 = arith.constant 5 : index
    %c0_26 = arith.constant 0 : index
    %c0_27 = arith.constant 0 : index
    %43 = vector.load %arg2[%c5, %c0_26, %c0_27] : memref<7x40x40xbf16, #tpu.memory_space<vmem>>, vector<1x40x40xbf16>
    %44 = vector.shape_cast %43 : vector<1x40x40xbf16> to vector<40x40xbf16>
    %cst_28 = arith.constant dense<0.000000e+00> : vector<40x128xf32>
    %45 = tpu.matmul %44, %42, %cst_28 {dimension_numbers = #tpu.dot_dimension_numbers<[1], [0], [0], [1], [0, 0, 1, 1], [], []>} : vector<40x40xbf16>, vector<40x128xbf16>, vector<40x128xf32> -> vector<40x128xf32>
    %c0_29 = arith.constant 0 : index
    %c5_30 = arith.constant 5 : index
    %46 = vector.load %arg3[%c0_29, %c5_30] : memref<40x7xf32, #tpu.memory_space<vmem>>, vector<40x1xf32>
    %47 = vector.broadcast %46 : vector<40x1xf32> to vector<40x128xf32>
    %48 = arith.addf %45, %47 : vector<40x128xf32>
    %49 = arith.truncf %48 : vector<40x128xf32> to vector<40x128xbf16>
    %50 = math.tanh %49 : vector<40x128xbf16>
    %c6 = arith.constant 6 : index
    %c0_31 = arith.constant 0 : index
    %c0_32 = arith.constant 0 : index
    %51 = vector.load %arg2[%c6, %c0_31, %c0_32] : memref<7x40x40xbf16, #tpu.memory_space<vmem>>, vector<1x40x40xbf16>
    %52 = vector.shape_cast %51 : vector<1x40x40xbf16> to vector<40x40xbf16>
    %53 = vector.extract_strided_slice %52 {offsets = [0, 0], sizes = [8, 40], strides = [1, 1]} : vector<40x40xbf16> to vector<8x40xbf16>
    %cst_33 = arith.constant dense<0.000000e+00> : vector<8x128xf32>
    %54 = tpu.matmul %53, %50, %cst_33 {dimension_numbers = #tpu.dot_dimension_numbers<[1], [0], [0], [1], [0, 0, 1, 1], [], []>} : vector<8x40xbf16>, vector<40x128xbf16>, vector<8x128xf32> -> vector<8x128xf32>
    %55 = vector.extract_strided_slice %54 {offsets = [0, 0], sizes = [1, 128], strides = [1, 1]} : vector<8x128xf32> to vector<1x128xf32>
    %c0_34 = arith.constant 0 : index
    %c6_35 = arith.constant 6 : index
    %56 = vector.load %arg3[%c0_34, %c6_35] : memref<40x7xf32, #tpu.memory_space<vmem>>, vector<1x1xf32>
    %57 = vector.broadcast %56 : vector<1x1xf32> to vector<1x128xf32>
    %58 = arith.addf %55, %57 : vector<1x128xf32>
    %c0_36 = arith.constant 0 : index
    %c0_37 = arith.constant 0 : index
    %59 = vector.load %arg4[%c0_36, %c0_37] : memref<1x128xf32, #tpu.memory_space<vmem>>, vector<1x128xf32>
    tpu.vector_store %arg4[%c0_36, %c0_37], %58 {strides = array<i32>} : memref<1x128xf32, #tpu.memory_space<vmem>>, vector<1x128xf32>,
    return
  }
  func.func @transform_0(%arg0: i32) -> (i32, i32) {
    %c0_i32 = arith.constant 0 : i32
    %c0_i32_0 = arith.constant 0 : i32
    return %c0_i32, %arg0 : i32, i32
  }
  func.func @transform_1(%arg0: i32) -> (i32, i32, i32) {
    %c0_i32 = arith.constant 0 : i32
    %c0_i32_0 = arith.constant 0 : i32
    %c0_i32_1 = arith.constant 0 : i32
    %c0_i32_2 = arith.constant 0 : i32
    return %c0_i32, %c0_i32_0, %c0_i32_1 : i32, i32, i32
  }
  func.func @transform_2(%arg0: i32) -> (i32, i32) {
    %c0_i32 = arith.constant 0 : i32
    %c0_i32_0 = arith.constant 0 : i32
    %c0_i32_1 = arith.constant 0 : i32
    return %c0_i32, %c0_i32_0 : i32, i32
  }
  func.func @transform_3(%arg0: i32) -> (i32, i32) {
    %c0_i32 = arith.constant 0 : i32
    %c0_i32_0 = arith.constant 0 : i32
    return %c0_i32, %arg0 : i32, i32
  }
}

</mosaic_0001>

<llo_original>
// kernel: tpu_custom_call.1
$region0: #{tpu_custom_call.1}
  #allocation0 [shape = 'u32[]', space=smem, size = 0x4, offset = 0x4, fixed_abs, tag = 'smem constant byte address 0x4 - core index']
  #allocation1 [shape = 'u32[144,128]{1,0:T(1,128)}', space=vmem, size = 0x12000, scoped, tag = 'internal scratch']
  %s0 = inlined_call_operand.vmem [shape: f32[3,256], index: 0, kind: input, shape index: {}]
  %s1 = inlined_call_operand.hbm [shape: bf16[7,40,40], index: 1, kind: input, shape index: {}]
  %s2 = inlined_call_operand.vmem [shape: f32[40,7], index: 2, kind: input, shape index: {}]
  %s3 = inlined_call_operand.hbm [shape: f32[1,256], index: 3, kind: output, shape index: {}]
  %s4 = sld [smem:[#allocation0]]
  $region49: #{tpu_custom_call.1} parent=0
    _
  %s6 = ssub.s32 1, %s4
  %s7 = scalar_select 0, %s6, %s4
  $region1: #{tpu_custom_call.1} parent=0
    #allocation2 [shape = 'u8[71680]{0}', space=vmem, size = 0x11800, scoped, tag = 'input window, operand 1, single buffered']
    #allocation3 [shape = 's32[2]{0}', space=sflag, size = 0x8, scoped, tag = 'scoped memory for tpu_custom_call.1']
    #allocation4 [shape = 's32[2]{0}', space=sflag, size = 0x8, scoped, tag = 'scoped memory for tpu_custom_call.1']
    #allocation5 [shape = 'u8[1024]{0}', space=vmem, size = 0x400, scoped, tag = 'output window, operand 0']
    %8 = vsyncpa [#allocation3], 0
    %9 = vsyncpa [#allocation4], 0
    %s10 = scalar_lea.sflag [#allocation4], 1
    %11 = vsyncpa %s10, 0
    loop: start=0, step=1, limit=4
    $region2: #{tpu_custom_call.1} parent=1 // loop_pre_header
      _
    $region3: #{tpu_custom_call.1} parent=1 // loop_header
      %s13 = sphi 0, %s17
      %p14 = scmp.ge.s32.totalorder %s13, 4
      %s23 = sphi 0, %s25
      %s26 = sphi 0, %s23
      %s27 = sphi 0, %s26
      %s43 = sphi 0, %s27
      %s47 = sphi 0, %s47
      %s49 = sphi 0, %s47
      %s50 = sphi 0, %s49
      %s64 = sphi 0, %s50
      %s68 = sphi 0, %s68
      %s70 = sphi 0, %s68
      %s71 = sphi 0, %s70
      %s85 = sphi 0, %s71
      %s91 = sphi 0, %s93
      %s94 = sphi 0, %s91
      %s95 = sphi 0, %s94
      %s111 = sphi 0, %s95
    $region4: #{tpu_custom_call.1} parent=1 // loop_header_branch
      %16 = sbr.rel (%p14) target = $region8
    $region5: #{tpu_custom_call.1} parent=1 // loop_body
      %s18 = ssub.s32 %s13, 1
      %s19 = ssub.s32 %s13, 2
      %s20 = sadd.s32 %s13, 1
      %s21 = ssub.s32 %s13, %s20
      %p22 = scmp.eq.s32.totalorder %s21, 0
      %s24 = sadd.s32 %s23, 1
      %s25 = scalar_select %p22, %s23, %s24
      %p28 = pneg %p22
      %p29 = scmp.eq.s32.totalorder %s13, 1
      %p30 = por %p28, %p29
      %p31 = scmp.ne.s32.totalorder %s23, %s26
      %p32 = scmp.eq.s32.totalorder %s13, 0
      %p33 = por %p31, %p32
      %p34 = scmp.ne.s32.totalorder %s23, %s26
      %p35 = scmp.eq.s32.totalorder %s18, 1
      %p36 = por %p34, %p35
      %p37 = scmp.ne.s32.totalorder %s26, %s27
      %p38 = scmp.eq.s32.totalorder %s18, 0
      %p39 = por %p37, %p38
      %p40 = scmp.ne.s32.totalorder %s26, %s27
      %p41 = scmp.eq.s32.totalorder %s19, 1
      %p42 = por %p40, %p41
      %p44 = scmp.ne.s32.totalorder %s27, %s43
      %p45 = scmp.eq.s32.totalorder %s19, 0
      %p46 = por %p44, %p45
      %s48 = sadd.s32 %s47, 1
      %p51 = scmp.eq.s32.totalorder %s13, 1
      %p52 = scmp.ne.s32.totalorder %s47, %s49
      %p53 = scmp.eq.s32.totalorder %s13, 0
      %p54 = por %p52, %p53
      %p55 = scmp.ne.s32.totalorder %s47, %s49
      %p56 = scmp.eq.s32.totalorder %s18, 1
      %p57 = por %p55, %p56
      %p58 = scmp.ne.s32.totalorder %s49, %s50
      %p59 = scmp.eq.s32.totalorder %s18, 0
      %p60 = por %p58, %p59
      %p61 = scmp.ne.s32.totalorder %s49, %s50
      %p62 = scmp.eq.s32.totalorder %s19, 1
      %p63 = por %p61, %p62
      %p65 = scmp.ne.s32.totalorder %s50, %s64
      %p66 = scmp.eq.s32.totalorder %s19, 0
      %p67 = por %p65, %p66
      %s69 = sadd.s32 %s68, 1
      %p72 = scmp.eq.s32.totalorder %s13, 1
      %p73 = scmp.ne.s32.totalorder %s68, %s70
      %p74 = scmp.eq.s32.totalorder %s13, 0
      %p75 = por %p73, %p74
      %p76 = scmp.ne.s32.totalorder %s68, %s70
      %p77 = scmp.eq.s32.totalorder %s18, 1
      %p78 = por %p76, %p77
      %p79 = scmp.ne.s32.totalorder %s70, %s71
      %p80 = scmp.eq.s32.totalorder %s18, 0
      %p81 = por %p79, %p80
      %p82 = scmp.ne.s32.totalorder %s70, %s71
      %p83 = scmp.eq.s32.totalorder %s19, 1
      %p84 = por %p82, %p83
      %p86 = scmp.ne.s32.totalorder %s71, %s85
      %p87 = scmp.eq.s32.totalorder %s19, 0
      %p88 = por %p86, %p87
      %s89 = ssub.s32 %s13, %s20
      %p90 = scmp.eq.s32.totalorder %s89, 0
      %s92 = sadd.s32 %s91, 1
      %s93 = scalar_select %p90, %s91, %s92
      %p96 = pneg %p90
      %p97 = scmp.eq.s32.totalorder %s13, 1
      %p98 = por %p96, %p97
      %p99 = scmp.ne.s32.totalorder %s91, %s94
      %p100 = scmp.eq.s32.totalorder %s13, 0
      %p101 = por %p99, %p100
      %p102 = scmp.ne.s32.totalorder %s91, %s94
      %p103 = scmp.eq.s32.totalorder %s18, 1
      %p104 = por %p102, %p103
      %p105 = scmp.ne.s32.totalorder %s94, %s95
      %p106 = scmp.eq.s32.totalorder %s18, 0
      %p107 = por %p105, %p106
      %p108 = scmp.ne.s32.totalorder %s94, %s95
      %p109 = scmp.eq.s32.totalorder %s19, 1
      %p110 = por %p108, %p109
      %p112 = scmp.ne.s32.totalorder %s95, %s111
      %p113 = scmp.eq.s32.totalorder %s19, 0
      %p114 = por %p112, %p113
      %p115 = scmp.le.s32.totalorder 1, %s13
      %p116 = scmp.lt.s32.totalorder %s13, 3
      %p117 = pnand %p115, %p116
      %p118 = pneg %p117
      // Predicated region
      $region9: #{tpu_custom_call.1} parent=5 // pred_check
        _
      $region10: #{tpu_custom_call.1} parent=5 // pred_check_branch
        %120 = sbr.rel (%p117) target = $region12
      $region11: #{tpu_custom_call.1} parent=5 // pred_region
        %s121 = ssub.s32 %s13, 1
        // Predicated region
        $region13: #{tpu_custom_call.1} parent=11 // pred_check
          %p122 = pneg %p60
        $region14: #{tpu_custom_call.1} parent=11 // pred_check_branch
          %124 = sbr.rel (%p122) target = $region16
        $region15: #{tpu_custom_call.1} parent=11 // pred_region
          %s126 = ssub.s32 2240, 2240
          %127 = vsyncadd [#allocation3], %s126
          %s128 = sshll.u32 [#allocation2], 4
          %s129 = int_to_ptr.vmem [resolvable:$true] %s128
          %134 = dma.hbm_to_vmem [thread:$0]  %s1, 2240, %s129, [#allocation3], 64, 64, 4
        $region16: #{tpu_custom_call.1} parent=11 // pred_fallthru
          _
        // Predicated region
        $region17: #{tpu_custom_call.1} parent=11 // pred_check
          %p135 = pneg %p81
        $region18: #{tpu_custom_call.1} parent=11 // pred_check_branch
          %137 = sbr.rel (%p135) target = $region20
        $region19: #{tpu_custom_call.1} parent=11 // pred_region
          _
        $region20: #{tpu_custom_call.1} parent=11 // pred_fallthru
          _
      $region12: #{tpu_custom_call.1} parent=5 // pred_fallthru
        _
      %p138 = scmp.lt.s32.totalorder %s13, 2
      // Predicated region
      $region21: #{tpu_custom_call.1} parent=5 // pred_check
        %p139 = pneg %p138
      $region22: #{tpu_custom_call.1} parent=5 // pred_check_branch
        %141 = sbr.rel (%p139) target = $region24
      $region23: #{tpu_custom_call.1} parent=5 // pred_region
        // Predicated region
        $region25: #{tpu_custom_call.1} parent=23 // pred_check
          %p142 = pneg %p33
        $region26: #{tpu_custom_call.1} parent=23 // pred_check_branch
          %144 = sbr.rel (%p142) target = $region28
        $region27: #{tpu_custom_call.1} parent=23 // pred_region
          %p145 = scmp.lt.s32.totalorder %s13, 1
          %s146 = scalar_select %p145, %s13, 1
          %s147 = smul.addr %s146, 4
          %s148 = scalar_lea.vmem %s0, %s147
        $region28: #{tpu_custom_call.1} parent=23 // pred_fallthru
          _
      $region24: #{tpu_custom_call.1} parent=5 // pred_fallthru
        _
      %p149 = scmp.le.s32.totalorder 1, %s13
      %p150 = scmp.lt.s32.totalorder %s13, 3
      %p151 = pnand %p149, %p150
      %p152 = pneg %p151
      // Predicated region
      $region29: #{tpu_custom_call.1} parent=5 // pred_check
        _
      $region30: #{tpu_custom_call.1} parent=5 // pred_check_branch
        %154 = sbr.rel (%p151) target = $region32
      $region31: #{tpu_custom_call.1} parent=5 // pred_region
        %s155 = ssub.s32 %s13, 1
        // Predicated region
        $region33: #{tpu_custom_call.1} parent=31 // pred_check
          %p156 = pneg %p60
        $region34: #{tpu_custom_call.1} parent=31 // pred_check_branch
          %158 = sbr.rel (%p156) target = $region36
        $region35: #{tpu_custom_call.1} parent=31 // pred_region
          %159 = dma.done [#allocation3], 2240
        $region36: #{tpu_custom_call.1} parent=31 // pred_fallthru
          _
        %p160 = scmp.lt.s32.totalorder %s18, 1
        %s161 = scalar_select %p160, %s18, 1
        %s162 = smul.addr %s161, 4
        %s163 = scalar_lea.vmem %s0, %s162
        %p164 = pneg %p39
        %p165 = pneg %p36
        %p166 = pneg %p60
        %p167 = pneg %p57
        %p168 = pneg %p81
        %p169 = pneg %p78
        %p170 = pneg %p107
        %p171 = pneg %p104
        %s172 = sand.u32 %s94, 1
        %s173 = scalar_lea.sflag [#allocation4], %s172
        %s174 = sand.u32 %s94, 1
        %s175 = scalar_lea.vmem [#allocation5], %s174
        %p176 = scmp.lt.s32.totalorder %s18, 1
        %s177 = scalar_select %p176, %s18, 1
        %s178 = smul.addr %s177, 4
        %s179 = scalar_lea.vmem %s0, %s178
        %v181 = vld [vmem:[%s179] sm:$0x7]
        %v182 = vpack.c.bf16 %v181, %v181
        %v183 = vld [vmem:[#allocation2] sm:$0xf]
        %v184 = vld [vmem:[#allocation2 + $0x4] sm:$0xf]
        %v185 = vld [vmem:[#allocation2 + $0x8] sm:$0xf]
        %v186 = vld [vmem:[#allocation2 + $0xc] sm:$0xf]
        %v187 = vld [vmem:[#allocation2 + $0x10] sm:$0xf]
        %v188 = vld [vmem:[%s2] sm:$0xff]
        %v189 = vld [vmem:[%s2 + $0x8] sm:$0xff]
        %v190 = vld [vmem:[%s2 + $0x10] sm:$0xff]
        %v191 = vld [vmem:[%s2 + $0x18] sm:$0xff]
        %v192 = vld [vmem:[%s2 + $0x20] sm:$0xff]
        %194 = vset.pattern.permute.xlu0 0
        %195 = vperm.xlu0 %194, %v188
        %v196 = vpop.permute.xlu0 %195
        %199 = vset.pattern.permute.xlu0 0
        %200 = vperm.xlu0 %199, %v189
        %v201 = vpop.permute.xlu0 %200
        %204 = vset.pattern.permute.xlu0 0
        %205 = vperm.xlu0 %204, %v190
        %v206 = vpop.permute.xlu0 %205
        %209 = vset.pattern.permute.xlu0 0
        %210 = vperm.xlu0 %209, %v191
        %v211 = vpop.permute.xlu0 %210
        %214 = vset.pattern.permute.xlu0 0
        %215 = vperm.xlu0 %214, %v192
        %v216 = vpop.permute.xlu0 %215
        %v223 = vunpack.c.l.b16 %v183
        %v224 = vunpack.c.l.b16 %v184
        %v225 = vunpack.c.l.b16 %v185
        %v226 = vunpack.c.l.b16 %v186
        %v227 = vunpack.c.l.b16 %v187
        %v228 = vpack.c.b16 %v224, %v223
        %v229 = vpack.c.b16 %v226, %v225
        %v230 = vpack.c.b16 %v227, %v227
        %vm231 = vcmask 23552
        %v233 = vsel %vm231, %v228, 0
        %v236 = vsel %vm231, %v229, 0
        %v239 = vsel %vm231, %v230, 0
        %vm241 = vcmask 1040384
        %vm242 = vcmask 1041408
        %v243 = vsel %vm241, 4294967295, 65535
        %v244 = vsel %vm242, %v243, 0
        %v246 = vand.u32 %v182, %v244
        %248 = vmatprep.subr.bf16.mxu0 0
        %249 = vmatpush1.bf16.msra.mxu0 %v246
        %250 = vmatprep.subr.bf16.mxu0 0
        %251 = vmatpush1.bf16.msra.mxu0 0
        %252 = vmatprep.subr.bf16.mxu0 0
        %253 = vmatpush1.bf16.msra.mxu0 0
        %254 = vmatprep.subr.bf16.mxu0 0
        %255 = vmatpush1.bf16.msra.mxu0 0
        %256 = vmatprep.subr.bf16.mxu0 0
        %257 = vmatpush1.bf16.msra.mxu0 0
        %258 = vmatprep.subr.bf16.mxu0 0
        %259 = vmatpush1.bf16.msra.mxu0 0
        %260 = vmatprep.subr.bf16.mxu0 0
        %261 = vmatpush1.bf16.msra.mxu0 0
        %262 = vmatprep.subr.bf16.mxu0 0
        %263 = vmatpush1.bf16.msra.mxu0 0
        %264 = vmatprep.subr.bf16.mxu0 0
        %265 = vmatpush1.bf16.msra.mxu0 0
        %266 = vmatprep.subr.bf16.mxu0 0
        %267 = vmatpush1.bf16.msra.mxu0 0
        %268 = vmatprep.subr.bf16.mxu0 0
        %269 = vmatpush1.bf16.msra.mxu0 0
        %270 = vmatprep.subr.bf16.mxu0 0
        %271 = vmatpush1.bf16.msra.mxu0 0
        %272 = vmatprep.subr.bf16.mxu0 0
        %273 = vmatpush1.bf16.msra.mxu0 0
        %274 = vmatprep.subr.bf16.mxu0 0
        %275 = vmatpush1.bf16.msra.mxu0 0
        %276 = vmatprep.subr.bf16.mxu0 0
        %277 = vmatpush1.bf16.msra.mxu0 0
        %278 = vmatprep.subr.bf16.mxu0 0
        %279 = vmatpush1.bf16.msra.mxu0 0
        %280 = vmatprep.mubr.bf16.mxu0 0
        %281 = vmatmul.mubr.bf16.gmra.mrb[0].mxu0 %v233
        %v282 = vpop.f32.mrb[0].mxu0
        %v283 = vadd.f32 %v196, %v282
        %v284 = vpop.f32.mrb[0].mxu0
        %v285 = vpop.f32.mrb[0].mxu0
        %v286 = vadd.f32 %v201, %v285
        %v287 = vpop.f32.mrb[0].mxu0
        %288 = vmatprep.mubr.bf16.mxu0 0
        %289 = vmatmul.mubr.bf16.gmra.mrb[0].mxu0 %v236
        %v290 = vpop.f32.mrb[0].mxu0
        %v291 = vadd.f32 %v206, %v290
        %v292 = vpop.f32.mrb[0].mxu0
        %v293 = vpop.f32.mrb[0].mxu0
        %v294 = vadd.f32 %v211, %v293
        %v295 = vpop.f32.mrb[0].mxu0
        %296 = vmatprep.mubr.bf16.mxu0 0
        %297 = vmatmul.mubr.bf16.gmra.mrb[0].mxu0 %v239
        %v298 = vpop.f32.mrb[0].mxu0
        %v299 = vadd.f32 %v216, %v298
        %v300 = vpop.f32.mrb[0].mxu0
        %v301 = vpop.f32.mrb[0].mxu0
        %v302 = vpop.f32.mrb[0].mxu0
        %303 = vdwg.mxu0
        %v304 = vpack.c.bf16 %v286, %v283
        %v305 = vpack.c.bf16 %v294, %v291
        %v306 = vpack.c.bf16 %v299, %v299
        %v307 = vtanh.bf16.pop %v304
        %v308 = vtanh.bf16.pop %v305
        %v309 = vtanh.bf16.pop %v306
        %s310 = scalar_lea.vmem [#allocation2], 20
        %v311 = vld [vmem:[%s310] sm:$0xf]
        %v312 = vld [vmem:[%s310 + $0x4] sm:$0xf]
        %v313 = vld [vmem:[%s310 + $0x8] sm:$0xf]
        %v314 = vld [vmem:[%s310 + $0xc] sm:$0xf]
        %v315 = vld [vmem:[%s310 + $0x10] sm:$0xf]
        %316 = vset.pattern.permute.xlu0 1
        %317 = vperm.xlu0 %316, %v188
        %v318 = vpop.permute.xlu0 %317
        %320 = vset.pattern.permute.xlu0 1
        %321 = vperm.xlu0 %320, %v189
        %v322 = vpop.permute.xlu0 %321
        %324 = vset.pattern.permute.xlu0 1
        %325 = vperm.xlu0 %324, %v190
        %v326 = vpop.permute.xlu0 %325
        %328 = vset.pattern.permute.xlu0 1
        %329 = vperm.xlu0 %328, %v191
        %v330 = vpop.permute.xlu0 %329
        %332 = vset.pattern.permute.xlu0 1
        %333 = vperm.xlu0 %332, %v192
        %v334 = vpop.permute.xlu0 %333
        %v341 = vunpack.c.l.b16 %v311
        %v342 = vunpack.c.l.b16 %v312
        %v343 = vunpack.c.l.b16 %v313
        %v344 = vunpack.c.l.b16 %v314
        %v345 = vunpack.c.l.b16 %v315
        %v346 = vpack.c.b16 %v342, %v341
        %v347 = vpack.c.b16 %v344, %v343
        %v348 = vpack.c.b16 %v345, %v345
        %vm349 = vcmask 326656
        %v351 = vsel %vm349, %v346, 0
        %v354 = vsel %vm349, %v347, 0
        %v357 = vsel %vm349, %v348, 0
        %vm359 = vcmask 1043456
        %v361 = vsel %vm359, %v309, 0
        %363 = vmatprep.subr.bf16.mxu0 0
        %364 = vmatpush1.bf16.msra.mxu0 %v307
        %365 = vmatprep.subr.bf16.mxu0 0
        %366 = vmatpush1.bf16.msra.mxu0 %v308
        %367 = vmatprep.subr.bf16.mxu0 0
        %368 = vmatpush1.bf16.msra.mxu0 %v361
        %369 = vmatprep.subr.bf16.mxu0 0
        %370 = vmatpush1.bf16.msra.mxu0 0
        %371 = vmatprep.subr.bf16.mxu0 0
        %372 = vmatpush1.bf16.msra.mxu0 0
        %373 = vmatprep.subr.bf16.mxu0 0
        %374 = vmatpush1.bf16.msra.mxu0 0
        %375 = vmatprep.subr.bf16.mxu0 0
        %376 = vmatpush1.bf16.msra.mxu0 0
        %377 = vmatprep.subr.bf16.mxu0 0
        %378 = vmatpush1.bf16.msra.mxu0 0
        %379 = vmatprep.subr.bf16.mxu0 0
        %380 = vmatpush1.bf16.msra.mxu0 0
        %381 = vmatprep.subr.bf16.mxu0 0
        %382 = vmatpush1.bf16.msra.mxu0 0
        %383 = vmatprep.subr.bf16.mxu0 0
        %384 = vmatpush1.bf16.msra.mxu0 0
        %385 = vmatprep.subr.bf16.mxu0 0
        %386 = vmatpush1.bf16.msra.mxu0 0
        %387 = vmatprep.subr.bf16.mxu0 0
        %388 = vmatpush1.bf16.msra.mxu0 0
        %389 = vmatprep.subr.bf16.mxu0 0
        %390 = vmatpush1.bf16.msra.mxu0 0
        %391 = vmatprep.subr.bf16.mxu0 0
        %392 = vmatpush1.bf16.msra.mxu0 0
        %393 = vmatprep.subr.bf16.mxu0 0
        %394 = vmatpush1.bf16.msra.mxu0 0
        %395 = vmatprep.mubr.bf16.mxu0 0
        %396 = vmatmul.mubr.bf16.gmra.mrb[0].mxu0 %v351
        %v397 = vpop.f32.mrb[0].mxu0
        %v398 = vadd.f32 %v318, %v397
        %v399 = vpop.f32.mrb[0].mxu0
        %v400 = vpop.f32.mrb[0].mxu0
        %v401 = vadd.f32 %v322, %v400
        %v402 = vpop.f32.mrb[0].mxu0
        %403 = vmatprep.mubr.bf16.mxu0 0
        %404 = vmatmul.mubr.bf16.gmra.mrb[0].mxu0 %v354
        %v405 = vpop.f32.mrb[0].mxu0
        %v406 = vadd.f32 %v326, %v405
        %v407 = vpop.f32.mrb[0].mxu0
        %v408 = vpop.f32.mrb[0].mxu0
        %v409 = vadd.f32 %v330, %v408
        %v410 = vpop.f32.mrb[0].mxu0
        %411 = vmatprep.mubr.bf16.mxu0 0
        %412 = vmatmul.mubr.bf16.gmra.mrb[0].mxu0 %v357
        %v413 = vpop.f32.mrb[0].mxu0
        %v414 = vadd.f32 %v334, %v413
        %v415 = vpop.f32.mrb[0].mxu0
        %v416 = vpop.f32.mrb[0].mxu0
        %v417 = vpop.f32.mrb[0].mxu0
        %418 = vdwg.mxu0
        %v419 = vpack.c.bf16 %v401, %v398
        %v420 = vpack.c.bf16 %v409, %v406
        %v421 = vpack.c.bf16 %v414, %v414
        %v422 = vtanh.bf16.pop %v419
        %v423 = vtanh.bf16.pop %v420
        %v424 = vtanh.bf16.pop %v421
        %s425 = scalar_lea.vmem [#allocation2], 40
        %v426 = vld [vmem:[%s425] sm:$0xf]
        %v427 = vld [vmem:[%s425 + $0x4] sm:$0xf]
        %v428 = vld [vmem:[%s425 + $0x8] sm:$0xf]
        %v429 = vld [vmem:[%s425 + $0xc] sm:$0xf]
        %v430 = vld [vmem:[%s425 + $0x10] sm:$0xf]
        %431 = vset.pattern.permute.xlu0 2
        %432 = vperm.xlu0 %431, %v188
        %v433 = vpop.permute.xlu0 %432
        %435 = vset.pattern.permute.xlu0 2
        %436 = vperm.xlu0 %435, %v189
        %v437 = vpop.permute.xlu0 %436
        %439 = vset.pattern.permute.xlu0 2
        %440 = vperm.xlu0 %439, %v190
        %v441 = vpop.permute.xlu0 %440
        %443 = vset.pattern.permute.xlu0 2
        %444 = vperm.xlu0 %443, %v191
        %v445 = vpop.permute.xlu0 %444
        %447 = vset.pattern.permute.xlu0 2
        %448 = vperm.xlu0 %447, %v192
        %v449 = vpop.permute.xlu0 %448
        %v456 = vunpack.c.l.b16 %v426
        %v457 = vunpack.c.l.b16 %v427
        %v458 = vunpack.c.l.b16 %v428
        %v459 = vunpack.c.l.b16 %v429
        %v460 = vunpack.c.l.b16 %v430
        %v461 = vpack.c.b16 %v457, %v456
        %v462 = vpack.c.b16 %v459, %v458
        %v463 = vpack.c.b16 %v460, %v460
        %v465 = vsel %vm349, %v461, 0
        %v468 = vsel %vm349, %v462, 0
        %v471 = vsel %vm349, %v463, 0
        %v474 = vsel %vm359, %v424, 0
        %476 = vmatprep.subr.bf16.mxu0 0
        %477 = vmatpush1.bf16.msra.mxu0 %v422
        %478 = vmatprep.subr.bf16.mxu0 0
        %479 = vmatpush1.bf16.msra.mxu0 %v423
        %480 = vmatprep.subr.bf16.mxu0 0
        %481 = vmatpush1.bf16.msra.mxu0 %v474
        %482 = vmatprep.subr.bf16.mxu0 0
        %483 = vmatpush1.bf16.msra.mxu0 0
        %484 = vmatprep.subr.bf16.mxu0 0
        %485 = vmatpush1.bf16.msra.mxu0 0
        %486 = vmatprep.subr.bf16.mxu0 0
        %487 = vmatpush1.bf16.msra.mxu0 0
        %488 = vmatprep.subr.bf16.mxu0 0
        %489 = vmatpush1.bf16.msra.mxu0 0
        %490 = vmatprep.subr.bf16.mxu0 0
        %491 = vmatpush1.bf16.msra.mxu0 0
        %492 = vmatprep.subr.bf16.mxu0 0
        %493 = vmatpush1.bf16.msra.mxu0 0
        %494 = vmatprep.subr.bf16.mxu0 0
        %495 = vmatpush1.bf16.msra.mxu0 0
        %496 = vmatprep.subr.bf16.mxu0 0
        %497 = vmatpush1.bf16.msra.mxu0 0
        %498 = vmatprep.subr.bf16.mxu0 0
        %499 = vmatpush1.bf16.msra.mxu0 0
        %500 = vmatprep.subr.bf16.mxu0 0
        %501 = vmatpush1.bf16.msra.mxu0 0
        %502 = vmatprep.subr.bf16.mxu0 0
        %503 = vmatpush1.bf16.msra.mxu0 0
        %504 = vmatprep.subr.bf16.mxu0 0
        %505 = vmatpush1.bf16.msra.mxu0 0
        %506 = vmatprep.subr.bf16.mxu0 0
        %507 = vmatpush1.bf16.msra.mxu0 0
        %508 = vmatprep.mubr.bf16.mxu0 0
        %509 = vmatmul.mubr.bf16.gmra.mrb[0].mxu0 %v465
        %v510 = vpop.f32.mrb[0].mxu0
        %v511 = vadd.f32 %v433, %v510
        %v512 = vpop.f32.mrb[0].mxu0
        %v513 = vpop.f32.mrb[0].mxu0
        %v514 = vadd.f32 %v437, %v513
        %v515 = vpop.f32.mrb[0].mxu0
        %516 = vmatprep.mubr.bf16.mxu0 0
        %517 = vmatmul.mubr.bf16.gmra.mrb[0].mxu0 %v468
        %v518 = vpop.f32.mrb[0].mxu0
        %v519 = vadd.f32 %v441, %v518
        %v520 = vpop.f32.mrb[0].mxu0
        %v521 = vpop.f32.mrb[0].mxu0
        %v522 = vadd.f32 %v445, %v521
        %v523 = vpop.f32.mrb[0].mxu0
        %524 = vmatprep.mubr.bf16.mxu0 0
        %525 = vmatmul.mubr.bf16.gmra.mrb[0].mxu0 %v471
        %v526 = vpop.f32.mrb[0].mxu0
        %v527 = vadd.f32 %v449, %v526
        %v528 = vpop.f32.mrb[0].mxu0
        %v529 = vpop.f32.mrb[0].mxu0
        %v530 = vpop.f32.mrb[0].mxu0
        %531 = vdwg.mxu0
        %v532 = vpack.c.bf16 %v514, %v511
        %v533 = vpack.c.bf16 %v522, %v519
        %v534 = vpack.c.bf16 %v527, %v527
        %v535 = vtanh.bf16.pop %v532
        %v536 = vtanh.bf16.pop %v533
        %v537 = vtanh.bf16.pop %v534
        %s538 = scalar_lea.vmem [#allocation2], 60
        %v539 = vld [vmem:[%s538] sm:$0xf]
        %v540 = vld [vmem:[%s538 + $0x4] sm:$0xf]
        %v541 = vld [vmem:[%s538 + $0x8] sm:$0xf]
        %v542 = vld [vmem:[%s538 + $0xc] sm:$0xf]
        %v543 = vld [vmem:[%s538 + $0x10] sm:$0xf]
        %544 = vset.pattern.permute.xlu0 3
        %545 = vperm.xlu0 %544, %v188
        %v546 = vpop.permute.xlu0 %545
        %548 = vset.pattern.permute.xlu0 3
        %549 = vperm.xlu0 %548, %v189
        %v550 = vpop.permute.xlu0 %549
        %552 = vset.pattern.permute.xlu0 3
        %553 = vperm.xlu0 %552, %v190
        %v554 = vpop.permute.xlu0 %553
        %556 = vset.pattern.permute.xlu0 3
        %557 = vperm.xlu0 %556, %v191
        %v558 = vpop.permute.xlu0 %557
        %560 = vset.pattern.permute.xlu0 3
        %561 = vperm.xlu0 %560, %v192
        %v562 = vpop.permute.xlu0 %561
        %v569 = vunpack.c.l.b16 %v539
        %v570 = vunpack.c.l.b16 %v540
        %v571 = vunpack.c.l.b16 %v541
        %v572 = vunpack.c.l.b16 %v542
        %v573 = vunpack.c.l.b16 %v543
        %v574 = vpack.c.b16 %v570, %v569
        %v575 = vpack.c.b16 %v572, %v571
        %v576 = vpack.c.b16 %v573, %v573
        %v578 = vsel %vm349, %v574, 0
        %v581 = vsel %vm349, %v575, 0
        %v584 = vsel %vm349, %v576, 0
        %v587 = vsel %vm359, %v537, 0
        %589 = vmatprep.subr.bf16.mxu0 0
        %590 = vmatpush1.bf16.msra.mxu0 %v535
        %591 = vmatprep.subr.bf16.mxu0 0
        %592 = vmatpush1.bf16.msra.mxu0 %v536
        %593 = vmatprep.subr.bf16.mxu0 0
        %594 = vmatpush1.bf16.msra.mxu0 %v587
        %595 = vmatprep.subr.bf16.mxu0 0
        %596 = vmatpush1.bf16.msra.mxu0 0
        %597 = vmatprep.subr.bf16.mxu0 0
        %598 = vmatpush1.bf16.msra.mxu0 0
        %599 = vmatprep.subr.bf16.mxu0 0
        %600 = vmatpush1.bf16.msra.mxu0 0
        %601 = vmatprep.subr.bf16.mxu0 0
        %602 = vmatpush1.bf16.msra.mxu0 0
        %603 = vmatprep.subr.bf16.mxu0 0
        %604 = vmatpush1.bf16.msra.mxu0 0
        %605 = vmatprep.subr.bf16.mxu0 0
        %606 = vmatpush1.bf16.msra.mxu0 0
        %607 = vmatprep.subr.bf16.mxu0 0
        %608 = vmatpush1.bf16.msra.mxu0 0
        %609 = vmatprep.subr.bf16.mxu0 0
        %610 = vmatpush1.bf16.msra.mxu0 0
        %611 = vmatprep.subr.bf16.mxu0 0
        %612 = vmatpush1.bf16.msra.mxu0 0
        %613 = vmatprep.subr.bf16.mxu0 0
        %614 = vmatpush1.bf16.msra.mxu0 0
        %615 = vmatprep.subr.bf16.mxu0 0
        %616 = vmatpush1.bf16.msra.mxu0 0
        %617 = vmatprep.subr.bf16.mxu0 0
        %618 = vmatpush1.bf16.msra.mxu0 0
        %619 = vmatprep.subr.bf16.mxu0 0
        %620 = vmatpush1.bf16.msra.mxu0 0
        %621 = vmatprep.mubr.bf16.mxu0 0
        %622 = vmatmul.mubr.bf16.gmra.mrb[0].mxu0 %v578
        %v623 = vpop.f32.mrb[0].mxu0
        %v624 = vadd.f32 %v546, %v623
        %v625 = vpop.f32.mrb[0].mxu0
        %v626 = vpop.f32.mrb[0].mxu0
        %v627 = vadd.f32 %v550, %v626
        %v628 = vpop.f32.mrb[0].mxu0
        %629 = vmatprep.mubr.bf16.mxu0 0
        %630 = vmatmul.mubr.bf16.gmra.mrb[0].mxu0 %v581
        %v631 = vpop.f32.mrb[0].mxu0
        %v632 = vadd.f32 %v554, %v631
        %v633 = vpop.f32.mrb[0].mxu0
        %v634 = vpop.f32.mrb[0].mxu0
        %v635 = vadd.f32 %v558, %v634
        %v636 = vpop.f32.mrb[0].mxu0
        %637 = vmatprep.mubr.bf16.mxu0 0
        %638 = vmatmul.mubr.bf16.gmra.mrb[0].mxu0 %v584
        %v639 = vpop.f32.mrb[0].mxu0
        %v640 = vadd.f32 %v562, %v639
        %v641 = vpop.f32.mrb[0].mxu0
        %v642 = vpop.f32.mrb[0].mxu0
        %v643 = vpop.f32.mrb[0].mxu0
        %644 = vdwg.mxu0
        %v645 = vpack.c.bf16 %v627, %v624
        %v646 = vpack.c.bf16 %v635, %v632
        %v647 = vpack.c.bf16 %v640, %v640
        %v648 = vtanh.bf16.pop %v645
        %v649 = vtanh.bf16.pop %v646
        %v650 = vtanh.bf16.pop %v647
        %s651 = scalar_lea.vmem [#allocation2], 80
        %v652 = vld [vmem:[%s651] sm:$0xf]
        %v653 = vld [vmem:[%s651 + $0x4] sm:$0xf]
        %v654 = vld [vmem:[%s651 + $0x8] sm:$0xf]
        %v655 = vld [vmem:[%s651 + $0xc] sm:$0xf]
        %v656 = vld [vmem:[%s651 + $0x10] sm:$0xf]
        %657 = vset.pattern.permute.xlu0 4
        %658 = vperm.xlu0 %657, %v188
        %v659 = vpop.permute.xlu0 %658
        %661 = vset.pattern.permute.xlu0 4
        %662 = vperm.xlu0 %661, %v189
        %v663 = vpop.permute.xlu0 %662
        %665 = vset.pattern.permute.xlu0 4
        %666 = vperm.xlu0 %665, %v190
        %v667 = vpop.permute.xlu0 %666
        %669 = vset.pattern.permute.xlu0 4
        %670 = vperm.xlu0 %669, %v191
        %v671 = vpop.permute.xlu0 %670
        %673 = vset.pattern.permute.xlu0 4
        %674 = vperm.xlu0 %673, %v192
        %v675 = vpop.permute.xlu0 %674
        %v682 = vunpack.c.l.b16 %v652
        %v683 = vunpack.c.l.b16 %v653
        %v684 = vunpack.c.l.b16 %v654
        %v685 = vunpack.c.l.b16 %v655
        %v686 = vunpack.c.l.b16 %v656
        %v687 = vpack.c.b16 %v683, %v682
        %v688 = vpack.c.b16 %v685, %v684
        %v689 = vpack.c.b16 %v686, %v686
        %v691 = vsel %vm349, %v687, 0
        %v694 = vsel %vm349, %v688, 0
        %v697 = vsel %vm349, %v689, 0
        %v700 = vsel %vm359, %v650, 0
        %702 = vmatprep.subr.bf16.mxu0 0
        %703 = vmatpush1.bf16.msra.mxu0 %v648
        %704 = vmatprep.subr.bf16.mxu0 0
        %705 = vmatpush1.bf16.msra.mxu0 %v649
        %706 = vmatprep.subr.bf16.mxu0 0
        %707 = vmatpush1.bf16.msra.mxu0 %v700
        %708 = vmatprep.subr.bf16.mxu0 0
        %709 = vmatpush1.bf16.msra.mxu0 0
        %710 = vmatprep.subr.bf16.mxu0 0
        %711 = vmatpush1.bf16.msra.mxu0 0
        %712 = vmatprep.subr.bf16.mxu0 0
        %713 = vmatpush1.bf16.msra.mxu0 0
        %714 = vmatprep.subr.bf16.mxu0 0
        %715 = vmatpush1.bf16.msra.mxu0 0
        %716 = vmatprep.subr.bf16.mxu0 0
        %717 = vmatpush1.bf16.msra.mxu0 0
        %718 = vmatprep.subr.bf16.mxu0 0
        %719 = vmatpush1.bf16.msra.mxu0 0
        %720 = vmatprep.subr.bf16.mxu0 0
        %721 = vmatpush1.bf16.msra.mxu0 0
        %722 = vmatprep.subr.bf16.mxu0 0
        %723 = vmatpush1.bf16.msra.mxu0 0
        %724 = vmatprep.subr.bf16.mxu0 0
        %725 = vmatpush1.bf16.msra.mxu0 0
        %726 = vmatprep.subr.bf16.mxu0 0
        %727 = vmatpush1.bf16.msra.mxu0 0
        %728 = vmatprep.subr.bf16.mxu0 0
        %729 = vmatpush1.bf16.msra.mxu0 0
        %730 = vmatprep.subr.bf16.mxu0 0
        %731 = vmatpush1.bf16.msra.mxu0 0
        %732 = vmatprep.subr.bf16.mxu0 0
        %733 = vmatpush1.bf16.msra.mxu0 0
        %734 = vmatprep.mubr.bf16.mxu0 0
        %735 = vmatmul.mubr.bf16.gmra.mrb[0].mxu0 %v691
        %v736 = vpop.f32.mrb[0].mxu0
        %v737 = vadd.f32 %v659, %v736
        %v738 = vpop.f32.mrb[0].mxu0
        %v739 = vpop.f32.mrb[0].mxu0
        %v740 = vadd.f32 %v663, %v739
        %v741 = vpop.f32.mrb[0].mxu0
        %742 = vmatprep.mubr.bf16.mxu0 0
        %743 = vmatmul.mubr.bf16.gmra.mrb[0].mxu0 %v694
        %v744 = vpop.f32.mrb[0].mxu0
        %v745 = vadd.f32 %v667, %v744
        %v746 = vpop.f32.mrb[0].mxu0
        %v747 = vpop.f32.mrb[0].mxu0
        %v748 = vadd.f32 %v671, %v747
        %v749 = vpop.f32.mrb[0].mxu0
        %750 = vmatprep.mubr.bf16.mxu0 0
        %751 = vmatmul.mubr.bf16.gmra.mrb[0].mxu0 %v697
        %v752 = vpop.f32.mrb[0].mxu0
        %v753 = vadd.f32 %v675, %v752
        %v754 = vpop.f32.mrb[0].mxu0
        %v755 = vpop.f32.mrb[0].mxu0
        %v756 = vpop.f32.mrb[0].mxu0
        %757 = vdwg.mxu0
        %v758 = vpack.c.bf16 %v740, %v737
        %v759 = vpack.c.bf16 %v748, %v745
        %v760 = vpack.c.bf16 %v753, %v753
        %v761 = vtanh.bf16.pop %v758
        %v762 = vtanh.bf16.pop %v759
        %v763 = vtanh.bf16.pop %v760
        %s764 = scalar_lea.vmem [#allocation2], 100
        %v765 = vld [vmem:[%s764] sm:$0xf]
        %v766 = vld [vmem:[%s764 + $0x4] sm:$0xf]
        %v767 = vld [vmem:[%s764 + $0x8] sm:$0xf]
        %v768 = vld [vmem:[%s764 + $0xc] sm:$0xf]
        %v769 = vld [vmem:[%s764 + $0x10] sm:$0xf]
        %770 = vset.pattern.permute.xlu0 5
        %771 = vperm.xlu0 %770, %v188
        %v772 = vpop.permute.xlu0 %771
        %774 = vset.pattern.permute.xlu0 5
        %775 = vperm.xlu0 %774, %v189
        %v776 = vpop.permute.xlu0 %775
        %778 = vset.pattern.permute.xlu0 5
        %779 = vperm.xlu0 %778, %v190
        %v780 = vpop.permute.xlu0 %779
        %782 = vset.pattern.permute.xlu0 5
        %783 = vperm.xlu0 %782, %v191
        %v784 = vpop.permute.xlu0 %783
        %786 = vset.pattern.permute.xlu0 5
        %787 = vperm.xlu0 %786, %v192
        %v788 = vpop.permute.xlu0 %787
        %v795 = vunpack.c.l.b16 %v765
        %v796 = vunpack.c.l.b16 %v766
        %v797 = vunpack.c.l.b16 %v767
        %v798 = vunpack.c.l.b16 %v768
        %v799 = vunpack.c.l.b16 %v769
        %v800 = vpack.c.b16 %v796, %v795
        %v801 = vpack.c.b16 %v798, %v797
        %v802 = vpack.c.b16 %v799, %v799
        %v804 = vsel %vm349, %v800, 0
        %v807 = vsel %vm349, %v801, 0
        %v810 = vsel %vm349, %v802, 0
        %v813 = vsel %vm359, %v763, 0
        %815 = vmatprep.subr.bf16.mxu0 0
        %816 = vmatpush1.bf16.msra.mxu0 %v761
        %817 = vmatprep.subr.bf16.mxu0 0
        %818 = vmatpush1.bf16.msra.mxu0 %v762
        %819 = vmatprep.subr.bf16.mxu0 0
        %820 = vmatpush1.bf16.msra.mxu0 %v813
        %821 = vmatprep.subr.bf16.mxu0 0
        %822 = vmatpush1.bf16.msra.mxu0 0
        %823 = vmatprep.subr.bf16.mxu0 0
        %824 = vmatpush1.bf16.msra.mxu0 0
        %825 = vmatprep.subr.bf16.mxu0 0
        %826 = vmatpush1.bf16.msra.mxu0 0
        %827 = vmatprep.subr.bf16.mxu0 0
        %828 = vmatpush1.bf16.msra.mxu0 0
        %829 = vmatprep.subr.bf16.mxu0 0
        %830 = vmatpush1.bf16.msra.mxu0 0
        %831 = vmatprep.subr.bf16.mxu0 0
        %832 = vmatpush1.bf16.msra.mxu0 0
        %833 = vmatprep.subr.bf16.mxu0 0
        %834 = vmatpush1.bf16.msra.mxu0 0
        %835 = vmatprep.subr.bf16.mxu0 0
        %836 = vmatpush1.bf16.msra.mxu0 0
        %837 = vmatprep.subr.bf16.mxu0 0
        %838 = vmatpush1.bf16.msra.mxu0 0
        %839 = vmatprep.subr.bf16.mxu0 0
        %840 = vmatpush1.bf16.msra.mxu0 0
        %841 = vmatprep.subr.bf16.mxu0 0
        %842 = vmatpush1.bf16.msra.mxu0 0
        %843 = vmatprep.subr.bf16.mxu0 0
        %844 = vmatpush1.bf16.msra.mxu0 0
        %845 = vmatprep.subr.bf16.mxu0 0
        %846 = vmatpush1.bf16.msra.mxu0 0
        %847 = vmatprep.mubr.bf16.mxu0 0
        %848 = vmatmul.mubr.bf16.gmra.mrb[0].mxu0 %v804
        %v849 = vpop.f32.mrb[0].mxu0
        %v850 = vadd.f32 %v772, %v849
        %v851 = vpop.f32.mrb[0].mxu0
        %v852 = vpop.f32.mrb[0].mxu0
        %v853 = vadd.f32 %v776, %v852
        %v854 = vpop.f32.mrb[0].mxu0
        %855 = vmatprep.mubr.bf16.mxu0 0
        %856 = vmatmul.mubr.bf16.gmra.mrb[0].mxu0 %v807
        %v857 = vpop.f32.mrb[0].mxu0
        %v858 = vadd.f32 %v780, %v857
        %v859 = vpop.f32.mrb[0].mxu0
        %v860 = vpop.f32.mrb[0].mxu0
        %v861 = vadd.f32 %v784, %v860
        %v862 = vpop.f32.mrb[0].mxu0
        %863 = vmatprep.mubr.bf16.mxu0 0
        %864 = vmatmul.mubr.bf16.gmra.mrb[0].mxu0 %v810
        %v865 = vpop.f32.mrb[0].mxu0
        %v866 = vadd.f32 %v788, %v865
        %v867 = vpop.f32.mrb[0].mxu0
        %v868 = vpop.f32.mrb[0].mxu0
        %v869 = vpop.f32.mrb[0].mxu0
        %870 = vdwg.mxu0
        %v871 = vpack.c.bf16 %v853, %v850
        %v872 = vpack.c.bf16 %v861, %v858
        %v873 = vpack.c.bf16 %v866, %v866
        %v874 = vtanh.bf16.pop %v871
        %v875 = vtanh.bf16.pop %v872
        %v876 = vtanh.bf16.pop %v873
        %s877 = scalar_lea.vmem [#allocation2], 120
        %v878 = vld [vmem:[%s877] sm:$0xf]
        %v880 = vsel %vm349, %v878, 0
        %v883 = vsel %vm359, %v876, 0
        %885 = vmatprep.subr.bf16.mxu0 0
        %886 = vmatpush1.bf16.msra.mxu0 %v874
        %887 = vmatprep.subr.bf16.mxu0 0
        %888 = vmatpush1.bf16.msra.mxu0 %v875
        %889 = vmatprep.subr.bf16.mxu0 0
        %890 = vmatpush1.bf16.msra.mxu0 %v883
        %891 = vmatprep.subr.bf16.mxu0 0
        %892 = vmatpush1.bf16.msra.mxu0 0
        %893 = vmatprep.subr.bf16.mxu0 0
        %894 = vmatpush1.bf16.msra.mxu0 0
        %895 = vmatprep.subr.bf16.mxu0 0
        %896 = vmatpush1.bf16.msra.mxu0 0
        %897 = vmatprep.subr.bf16.mxu0 0
        %898 = vmatpush1.bf16.msra.mxu0 0
        %899 = vmatprep.subr.bf16.mxu0 0
        %900 = vmatpush1.bf16.msra.mxu0 0
        %901 = vmatprep.subr.bf16.mxu0 0
        %902 = vmatpush1.bf16.msra.mxu0 0
        %903 = vmatprep.subr.bf16.mxu0 0
        %904 = vmatpush1.bf16.msra.mxu0 0
        %905 = vmatprep.subr.bf16.mxu0 0
        %906 = vmatpush1.bf16.msra.mxu0 0
        %907 = vmatprep.subr.bf16.mxu0 0
        %908 = vmatpush1.bf16.msra.mxu0 0
        %909 = vmatprep.subr.bf16.mxu0 0
        %910 = vmatpush1.bf16.msra.mxu0 0
        %911 = vmatprep.subr.bf16.mxu0 0
        %912 = vmatpush1.bf16.msra.mxu0 0
        %913 = vmatprep.subr.bf16.mxu0 0
        %914 = vmatpush1.bf16.msra.mxu0 0
        %915 = vmatprep.subr.bf16.mxu0 0
        %916 = vmatpush1.bf16.msra.mxu0 0
        %917 = vmatprep.mubr.bf16.mxu0 0
        %918 = vmatmul.mubr.bf16.gmra.mrb[0].mxu0 %v880
        %v919 = vpop.f32.mrb[0].mxu0
        %v920 = vadd.f32 0.0, %v919
        %v921 = vpop.f32.mrb[0].mxu0
        %v922 = vpop.f32.mrb[0].mxu0
        %v923 = vpop.f32.mrb[0].mxu0
        %924 = vdwg.mxu0
        %v925 = vld [vmem:[%s2] sm:$0x1]
        %927 = vset.pattern.permute.xlu0 6
        %928 = vperm.xlu0 %927, %v925
        %v929 = vpop.permute.xlu0 %928
        %v931 = vadd.f32 %v920, %v929
        %932 = vst [vmem:[%s175] sm:$0x1] %v931
        %s933 = sand.u32 %s94, 1
        %s934 = scalar_lea.sflag [#allocation4], %s933
        %s935 = sand.u32 %s94, 1
        %s936 = scalar_lea.vmem [#allocation5], %s935
        // Predicated region
        $region37: #{tpu_custom_call.1} parent=31 // pred_check
          %p937 = pneg %p104
        $region38: #{tpu_custom_call.1} parent=31 // pred_check_branch
          %939 = sbr.rel (%p937) target = $region40
        $region39: #{tpu_custom_call.1} parent=31 // pred_region
          %s941 = ssub.s32 16, 16
          %942 = vsyncadd %s934, %s941
          %s943 = smul.addr %s18, 16
          %s944 = scalar_lea.hbm %s3, %s943
          %s946 = sshll.u32 %s936, 4
          %s947 = int_to_ptr.vmem [resolvable:$true] %s946
          %949 = dma.vmem_to_hbm [thread:$0]  %s947, 16, %s944, %s934
        $region40: #{tpu_custom_call.1} parent=31 // pred_fallthru
          _
      $region32: #{tpu_custom_call.1} parent=5 // pred_fallthru
        _
      %p950 = scmp.le.s32.totalorder 2, %s13
      // Predicated region
      $region41: #{tpu_custom_call.1} parent=5 // pred_check
        %p951 = pneg %p950
      $region42: #{tpu_custom_call.1} parent=5 // pred_check_branch
        %953 = sbr.rel (%p951) target = $region44
      $region43: #{tpu_custom_call.1} parent=5 // pred_region
        %s954 = ssub.s32 %s13, 2
        // Predicated region
        $region45: #{tpu_custom_call.1} parent=43 // pred_check
          %p955 = pneg %p110
        $region46: #{tpu_custom_call.1} parent=43 // pred_check_branch
          %957 = sbr.rel (%p955) target = $region48
        $region47: #{tpu_custom_call.1} parent=43 // pred_region
          %s958 = sand.u32 %s95, 1
          %s959 = scalar_lea.sflag [#allocation4], %s958
          %s960 = sand.u32 %s95, 1
          %s961 = scalar_lea.vmem [#allocation5], %s960
          %962 = dma.done %s959, 16
        $region48: #{tpu_custom_call.1} parent=43 // pred_fallthru
          _
      $region44: #{tpu_custom_call.1} parent=5 // pred_fallthru
        _
    $region6: #{tpu_custom_call.1} parent=1 // loop_footer
      %s17 = sadd.s32 1, %s13
    $region7: #{tpu_custom_call.1} parent=1 // loop_footer_branch
      %12 = sbr.rel target = $region3
    $region8: #{tpu_custom_call.1} parent=1 // loop_exit
      _
    %963 = vsyncpa [#allocation3], 1
    %s964 = scalar_lea.sflag [#allocation3], 1
    %965 = vsyncpa %s964, 1
    %966 = vsyncpa [#allocation4], 1
    %s967 = scalar_lea.sflag [#allocation4], 1
    %968 = vsyncpa %s967, 1

</llo_original>
